<compile_context>
chip_gen: v7x
topology: tpu7x:2x2x1
jax: 0.10.0
libtpu: 0.0.40
codegen_flags: <defaults>
</compile_context>

<pallas_src>
import functools
import math

import jax
import jax.numpy as jnp
from jax import lax
from jax.experimental import pallas as pl
from jax.experimental.pallas import tpu as pltpu


def _round_up(x, m):
    return -(-x // m) * m


def _cdiv(a, b):
    return -(-a // b)


def _padded_rows(c, dtype):
    """Sublane-padded row count for a (c, lanes) VMEM block of this dtype."""
    itemsize = jnp.dtype(dtype).itemsize
    packing = max(1, 4 // itemsize)          # rows packed per 32-bit sublane
    return _round_up(max(int(c), 1), 8 * packing)


def _precision_partials_kernel(logs_ref, yb_ref, out_ref, *, tile_s, s_valid, needs_mask):
    s_idx = pl.program_id(1)

    logs = logs_ref[0].astype(jnp.float32)   # (C, tile_s)
    yb = yb_ref[0].astype(jnp.float32)       # (C, tile_s)

    # Softmax over the channel axis (sublanes, torch dim=1).
    m = jnp.max(logs, axis=0, keepdims=True)
    e = jnp.exp(logs - m)
    denom = jnp.sum(e, axis=0, keepdims=True)            # (1, tile_s)
    # EUP reciprocal + one Newton step: ~f32 accuracy, frees VALU divide slots.
    inv = pl.reciprocal(denom, approx=True)
    inv = inv * (2.0 - denom * inv)
    pred = e * inv                                        # (C, tile_s)
    prod = yb * pred                                      # (C, tile_s)

    def _write(tp, pv):
        # Lane-dense full-block store: rows [0, C) = tp, rows [C, 2C) = pred_vol.
        vals = jnp.concatenate([tp, pv], axis=0)          # (2C, 1)
        out_ref[0, 0] = jnp.broadcast_to(vals, out_ref.shape[2:]).astype(jnp.float32)

    if needs_mask:
        last = pl.num_programs(1) - 1

        @pl.when(s_idx < last)
        def _():
            _write(jnp.sum(prod, axis=1, keepdims=True),
                   jnp.sum(pred, axis=1, keepdims=True))

        @pl.when(s_idx == last)
        def _():
            # Only the last spatial tile is partial: mask its padded lanes.  Mask is
            # applied to the product as well so garbage (possibly NaN/Inf) in the
            # un-DMA'd tail can never leak into the sums.
            col = lax.broadcasted_iota(jnp.int32, (1, tile_s), 1)
            valid = (s_idx * tile_s + col) < s_valid       # (1, tile_s) bool
            _write(jnp.sum(jnp.where(valid, prod, 0.0), axis=1, keepdims=True),
                   jnp.sum(jnp.where(valid, pred, 0.0), axis=1, keepdims=True))
    else:
        _write(jnp.sum(prod, axis=1, keepdims=True),
               jnp.sum(pred, axis=1, keepdims=True))


def precision_loss(logs, yb_oh, eps=1e-5, tile_s=None):
    # TODO(synk): optional `mask` argument not implemented (mask=None path only).
    assert logs.shape == yb_oh.shape
    N, C = int(logs.shape[0]), int(logs.shape[1])
    assert C >= 2
    S = int(math.prod(logs.shape[2:]))

    # Contiguous-dim reshape only (no HBM copy); keep native dtypes, cast in-kernel.
    logs_r = logs.reshape(N, C, S)
    yb_r = yb_oh.reshape(N, C, S)

    # --- spatial tile: sublane-padding-aware VMEM budget, then balanced -------------
    if tile_s is None:
        budget = 8 * 1024 * 1024   # actual footprint target: fits all gens' scoped VMEM
        per_lane = (
            2 * _padded_rows(C, logs_r.dtype) * jnp.dtype(logs_r.dtype).itemsize  # 2x-buffered logs
            + 2 * _padded_rows(C, yb_r.dtype) * jnp.dtype(yb_r.dtype).itemsize    # 2x-buffered yb
            + 5 * _padded_rows(C, jnp.float32) * 4                                # f32 body temporaries
        )
        t_max = max(128, (budget // per_lane) // 128 * 128)
    else:
        t_max = int(tile_s)
        assert t_max % 128 == 0
    n_s = _cdiv(S, t_max)
    tile_s = _round_up(_cdiv(S, n_s), 128)     # balanced -> padding < 128 lanes per batch
    n_s = _cdiv(S, tile_s)
    needs_mask = (n_s * tile_s != S)

    kernel = functools.partial(
        _precision_partials_kernel,
        tile_s=int(tile_s), s_valid=int(S), needs_mask=bool(needs_mask))

    # Explicit VMEM contract (padded block sizes + temporaries, with margin).
    logs_blk = _padded_rows(C, logs_r.dtype) * jnp.dtype(logs_r.dtype).itemsize * tile_s
    yb_blk = _padded_rows(C, yb_r.dtype) * jnp.dtype(yb_r.dtype).itemsize * tile_s
    f32_blk = _padded_rows(C, jnp.float32) * 4 * tile_s
    out_blk = _padded_rows(2 * C, jnp.float32) * 4 * 128
    vmem_need = 2 * (logs_blk + yb_blk + out_blk) + 6 * f32_blk
    vmem_limit = int(min(max(2 * vmem_need, 20 << 20), 32 << 20))

    bytes_accessed = (
        N * C * S * (jnp.dtype(logs_r.dtype).itemsize + jnp.dtype(yb_r.dtype).itemsize)
        + N * n_s * 2 * C * 128 * 4)
    cost = pl.CostEstimate(flops=8 * N * C * S,
                           transcendentals=N * C * S,
                           bytes_accessed=bytes_accessed)

    out = pl.pallas_call(
        kernel,
        out_shape=jax.ShapeDtypeStruct((N, n_s, 2 * C, 128), jnp.float32),
        grid_spec=pltpu.PrefetchScalarGridSpec(
            num_scalar_prefetch=0,
            grid=(N, n_s),
            in_specs=[
                pl.BlockSpec((1, C, tile_s), lambda n, s: (n, 0, s)),
                pl.BlockSpec((1, C, tile_s), lambda n, s: (n, 0, s)),
            ],
            out_specs=pl.BlockSpec((1, 1, 2 * C, 128), lambda n, s: (n, s, 0, 0)),
        ),
        compiler_params=pltpu.CompilerParams(
            dimension_semantics=("parallel", "parallel"),
            vmem_limit_bytes=vmem_limit),
        cost_estimate=cost,
    )(logs_r, yb_r)

    tp = jnp.sum(out[:, :, :C, 0], axis=1)     # (N, C)
    pv = jnp.sum(out[:, :, C:, 0], axis=1)     # (N, C)
    prec = tp[:, 1:] / (pv[:, 1:] + jnp.float32(eps))
    return 1.0 - prec.mean()


def precision_loss_ref(logs, yb_oh, eps=1e-5):
    logs = logs.astype(jnp.float32)
    yb_oh = yb_oh.astype(jnp.float32)
    pred = jax.nn.softmax(logs, axis=1)
    dims = tuple(range(2, logs.ndim))
    pred = pred[:, 1:]
    yb = yb_oh[:, 1:]
    tp = jnp.sum(yb * pred, axis=dims)
    pred_vol = jnp.sum(pred, axis=dims)
    prec = tp / (pred_vol + eps)
    return 1.0 - prec.mean()


def _make_inputs(key, N, C, spatial, yb_dtype=jnp.bfloat16):
    k1, k2 = jax.random.split(key)
    logs = jax.random.normal(k1, (N, C) + spatial, dtype=jnp.float32)
    labels = jax.random.randint(k2, (N,) + spatial, 0, C)
    yb_oh = jax.nn.one_hot(labels, C, dtype=yb_dtype)                   # (..., C)
    perm = (0, len(spatial) + 1) + tuple(range(1, len(spatial) + 1))    # -> (N, C, ...)
    yb_oh = jnp.transpose(yb_oh, perm)
    return logs, yb_oh


if __name__ == "__main__":
    key = jax.random.PRNGKey(0)
    k1, k2, k3 = jax.random.split(key, 3)

    # Test 1: canonical small shape, aligned spatial dim (single full tile).
    logs, yb = _make_inputs(k1, N=2, C=4, spatial=(16, 16))
    loss = jax.block_until_ready(precision_loss(logs, yb))
    ref = precision_loss_ref(logs, yb)
    assert jnp.allclose(loss, ref, rtol=1e-4, atol=1e-5), (loss, ref)

    # Test 2: ragged spatial size -> exercises the gated lane mask on a partial block.
    logs, yb = _make_inputs(k2, N=2, C=3, spatial=(7, 9), yb_dtype=jnp.float32)
    loss = jax.block_until_ready(precision_loss(logs, yb))
    ref = precision_loss_ref(logs, yb)
    assert jnp.allclose(loss, ref, rtol=1e-4, atol=1e-5), (loss, ref)

    # Test 3: multiple spatial tiles -> exercises per-tile partials + wrapper reduce.
    logs, yb = _make_inputs(k3, N=2, C=4, spatial=(16, 24))
    loss = jax.block_until_ready(precision_loss(logs, yb, tile_s=128))
    ref = precision_loss_ref(logs, yb)
    assert jnp.allclose(loss, ref, rtol=1e-4, atol=1e-5), (loss, ref)

    print("KERNEL_OK")
</pallas_src>

<mosaic_0001>
module attributes {stable_mosaic.version = 11 : i64} {
  func.func @_precision_partials_kernel(%arg0: i32, %arg1: i32, %arg2: memref<1x4x256xf32, #tpu.memory_space<vmem>>, %arg3: memref<1x4x256xbf16, #tpu.memory_space<vmem>>, %arg4: memref<1x1x8x128xf32, #tpu.memory_space<vmem>>) attributes {dimension_semantics = [#tpu.dimension_semantics<parallel>, #tpu.dimension_semantics<parallel>], iteration_bounds = array<i64: 2, 1>, scalar_prefetch = 0 : i64, scratch_operands = 0 : i64, tpu.core_type = #tpu.core_type<tc>, window_params = [{transform_indices = @transform_0, window_bounds = array<i64: 1, 4, 256>}, {transform_indices = @transform_1, window_bounds = array<i64: 1, 4, 256>}, {transform_indices = @transform_2, window_bounds = array<i64: 1, 1, 8, 128>}]} {
    %c0 = arith.constant 0 : index
    %c0_0 = arith.constant 0 : index
    %c0_1 = arith.constant 0 : index
    %0 = vector.load %arg2[%c0, %c0_0, %c0_1] : memref<1x4x256xf32, #tpu.memory_space<vmem>>, vector<1x4x256xf32>
    %1 = vector.shape_cast %0 : vector<1x4x256xf32> to vector<4x256xf32>
    %c0_2 = arith.constant 0 : index
    %c0_3 = arith.constant 0 : index
    %c0_4 = arith.constant 0 : index
    %2 = vector.load %arg3[%c0_2, %c0_3, %c0_4] : memref<1x4x256xbf16, #tpu.memory_space<vmem>>, vector<1x4x256xbf16>
    %3 = vector.shape_cast %2 : vector<1x4x256xbf16> to vector<4x256xbf16>
    %4 = arith.extf %3 : vector<4x256xbf16> to vector<4x256xf32>
    %cst = arith.constant dense<0xFF800000> : vector<256xf32>
    %5 = vector.multi_reduction <maximumf>, %1, %cst [0] : vector<4x256xf32> to vector<256xf32>
    %6 = vector.shape_cast %5 : vector<256xf32> to vector<1x256xf32>
    %7 = vector.broadcast %6 : vector<1x256xf32> to vector<4x256xf32>
    %8 = arith.subf %1, %7 : vector<4x256xf32>
    %9 = math.exp %8 : vector<4x256xf32>
    %cst_5 = arith.constant dense<0.000000e+00> : vector<256xf32>
    %10 = vector.multi_reduction <add>, %9, %cst_5 [0] : vector<4x256xf32> to vector<256xf32>
    %11 = vector.shape_cast %10 : vector<256xf32> to vector<1x256xf32>
    %12 = tpu.reciprocal %11 {approx = true} : vector<1x256xf32> -> vector<1x256xf32>
    %13 = arith.mulf %11, %12 : vector<1x256xf32>
    %cst_6 = arith.constant 2.000000e+00 : f32
    %14 = vector.broadcast %cst_6 : f32 to vector<1x256xf32>
    %15 = arith.subf %14, %13 : vector<1x256xf32>
    %16 = arith.mulf %12, %15 : vector<1x256xf32>
    %17 = vector.broadcast %16 : vector<1x256xf32> to vector<4x256xf32>
    %18 = arith.mulf %9, %17 : vector<4x256xf32>
    %19 = arith.mulf %4, %18 : vector<4x256xf32>
    %cst_7 = arith.constant dense<0.000000e+00> : vector<4xf32>
    %20 = vector.multi_reduction <add>, %19, %cst_7 [1] : vector<4x256xf32> to vector<4xf32>
    %21 = vector.shape_cast %20 : vector<4xf32> to vector<4x1xf32>
    %cst_8 = arith.constant dense<0.000000e+00> : vector<4xf32>
    %22 = vector.multi_reduction <add>, %18, %cst_8 [1] : vector<4x256xf32> to vector<4xf32>
    %23 = vector.shape_cast %22 : vector<4xf32> to vector<4x1xf32>
    %24 = tpu.concatenate %21, %23 in 0 : vector<4x1xf32>, vector<4x1xf32> -> vector<8x1xf32>
    %25 = vector.shape_cast %24 : vector<8x1xf32> to vector<8x1xf32>
    %26 = vector.broadcast %25 : vector<8x1xf32> to vector<8x128xf32>
    %c0_9 = arith.constant 0 : index
    %c0_10 = arith.constant 0 : index
    %c0_11 = arith.constant 0 : index
    %c0_12 = arith.constant 0 : index
    %27 = vector.load %arg4[%c0_9, %c0_10, %c0_11, %c0_12] : memref<1x1x8x128xf32, #tpu.memory_space<vmem>>, vector<1x1x8x128xf32>
    %28 = vector.shape_cast %27 : vector<1x1x8x128xf32> to vector<8x128xf32>
    %29 = vector.shape_cast %26 : vector<8x128xf32> to vector<1x1x8x128xf32>
    tpu.vector_store %arg4[%c0_9, %c0_10, %c0_11, %c0_12], %29 {strides = array<i32>} : memref<1x1x8x128xf32, #tpu.memory_space<vmem>>, vector<1x1x8x128xf32>,
    return
  }
  func.func @transform_0(%arg0: i32, %arg1: i32) -> (i32, i32, i32) {
    %c0_i32 = arith.constant 0 : i32
    %c0_i32_0 = arith.constant 0 : i32
    return %arg0, %c0_i32, %arg1 : i32, i32, i32
  }
  func.func @transform_1(%arg0: i32, %arg1: i32) -> (i32, i32, i32) {
    %c0_i32 = arith.constant 0 : i32
    %c0_i32_0 = arith.constant 0 : i32
    return %arg0, %c0_i32, %arg1 : i32, i32, i32
  }
  func.func @transform_2(%arg0: i32, %arg1: i32) -> (i32, i32, i32, i32) {
    %c0_i32 = arith.constant 0 : i32
    %c0_i32_0 = arith.constant 0 : i32
    %c0_i32_1 = arith.constant 0 : i32
    return %arg0, %arg1, %c0_i32, %c0_i32_0 : i32, i32, i32, i32
  }
}

</mosaic_0001>

<llo_original>
// kernel: tpu_custom_call.1
$region0: #{tpu_custom_call.1}
  #allocation0 [shape = 'u32[]', space=smem, size = 0x4, offset = 0x4, fixed_abs, tag = 'smem constant byte address 0x4 - core index']
  #allocation1 [shape = 'u32[144,128]{1,0:T(1,128)}', space=vmem, size = 0x12000, scoped, tag = 'internal scratch']
  %s0 = inlined_call_operand.hbm [shape: f32[2,4,256], index: 0, kind: input, shape index: {}]
  %s1 = inlined_call_operand.hbm [shape: bf16[2,4,256], index: 1, kind: input, shape index: {}]
  %s2 = inlined_call_operand.hbm [shape: f32[2,1,8,128], index: 2, kind: output, shape index: {}]
  %s3 = sld [smem:[#allocation0]]
  $region49: #{tpu_custom_call.1} parent=0
    _
  %s5 = ssub.s32 1, %s3
  %s6 = scalar_select 0, %s5, %s3
  $region1: #{tpu_custom_call.1} parent=0
    #allocation2 [shape = 'u8[8192]{0}', space=vmem, size = 0x2000, scoped, tag = 'input window, operand 0']
    #allocation3 [shape = 's32[2]{0}', space=sflag, size = 0x8, scoped, tag = 'scoped memory for tpu_custom_call.1']
    #allocation4 [shape = 's32[2]{0}', space=sflag, size = 0x8, scoped, tag = 'scoped memory for tpu_custom_call.1']
    #allocation5 [shape = 'u8[4096]{0}', space=vmem, size = 0x1000, scoped, tag = 'input window, operand 1']
    #allocation6 [shape = 's32[2]{0}', space=sflag, size = 0x8, scoped, tag = 'scoped memory for tpu_custom_call.1']
    #allocation7 [shape = 'u8[8192]{0}', space=vmem, size = 0x2000, scoped, tag = 'output window, operand 0']
    %7 = vsyncpa [#allocation3], 0
    %s8 = scalar_lea.sflag [#allocation3], 1
    %9 = vsyncpa %s8, 0
    %10 = vsyncpa [#allocation6], 0
    %s11 = scalar_lea.sflag [#allocation6], 1
    %12 = vsyncpa %s11, 0
    %13 = vsyncpa [#allocation4], 0
    %s14 = scalar_lea.sflag [#allocation4], 1
    %15 = vsyncpa %s14, 0
    loop: start=0, step=1, limit=4
    $region2: #{tpu_custom_call.1} parent=1 // loop_pre_header
      _
    $region3: #{tpu_custom_call.1} parent=1 // loop_header
      %s17 = sphi 0, %s21
      %p18 = scmp.ge.s32.totalorder %s17, 4
      %s24 = sphi 0, %s36
      %s25 = sphi 0, %s32
      %s26 = sphi 0, %s24
      %s27 = sphi 0, %s25
      %s28 = sphi 0, %s26
      %s29 = sphi 0, %s27
      %s41 = sphi 0, %s43
      %s44 = sphi 0, %s41
      %s45 = sphi 0, %s44
      %s61 = sphi 0, %s45
      %s69 = sphi 0, %s71
      %s72 = sphi 0, %s69
      %s73 = sphi 0, %s72
      %s89 = sphi 0, %s73
      %s97 = sphi 0, %s99
      %s100 = sphi 0, %s97
      %s101 = sphi 0, %s100
      %s117 = sphi 0, %s101
    $region4: #{tpu_custom_call.1} parent=1 // loop_header_branch
      %20 = sbr.rel (%p18) target = $region8
    $region5: #{tpu_custom_call.1} parent=1 // loop_body
      %s22 = ssub.s32 %s17, 1
      %s23 = ssub.s32 %s17, 2
      %s30 = sadd.s32 1, %s25
      %p31 = scmp.ge.s32.totalorder %s30, 1
      %s32 = scalar_select %p31, 0, %s30
      %s33 = sadd.s32 1, %s24
      %s34 = scalar_select %p31, %s33, %s24
      %p35 = scmp.ge.s32.totalorder %s34, 2
      %s36 = scalar_select %p35, 0, %s34
      %s37 = ssub.s32 %s24, %s36
      %s38 = ssub.s32 %s25, %s32
      %s39 = sor.u32 %s37, %s38
      %p40 = scmp.eq.s32.totalorder %s39, 0
      %s42 = sadd.s32 %s41, 1
      %s43 = scalar_select %p40, %s41, %s42
      %p46 = pneg %p40
      %p47 = scmp.eq.s32.totalorder %s17, 1
      %p48 = por %p46, %p47
      %p49 = scmp.ne.s32.totalorder %s41, %s44
      %p50 = scmp.eq.s32.totalorder %s17, 0
      %p51 = por %p49, %p50
      %p52 = scmp.ne.s32.totalorder %s41, %s44
      %p53 = scmp.eq.s32.totalorder %s22, 1
      %p54 = por %p52, %p53
      %p55 = scmp.ne.s32.totalorder %s44, %s45
      %p56 = scmp.eq.s32.totalorder %s22, 0
      %p57 = por %p55, %p56
      %p58 = scmp.ne.s32.totalorder %s44, %s45
      %p59 = scmp.eq.s32.totalorder %s23, 1
      %p60 = por %p58, %p59
      %p62 = scmp.ne.s32.totalorder %s45, %s61
      %p63 = scmp.eq.s32.totalorder %s23, 0
      %p64 = por %p62, %p63
      %s65 = ssub.s32 %s24, %s36
      %s66 = ssub.s32 %s25, %s32
      %s67 = sor.u32 %s65, %s66
      %p68 = scmp.eq.s32.totalorder %s67, 0
      %s70 = sadd.s32 %s69, 1
      %s71 = scalar_select %p68, %s69, %s70
      %p74 = pneg %p68
      %p75 = scmp.eq.s32.totalorder %s17, 1
      %p76 = por %p74, %p75
      %p77 = scmp.ne.s32.totalorder %s69, %s72
      %p78 = scmp.eq.s32.totalorder %s17, 0
      %p79 = por %p77, %p78
      %p80 = scmp.ne.s32.totalorder %s69, %s72
      %p81 = scmp.eq.s32.totalorder %s22, 1
      %p82 = por %p80, %p81
      %p83 = scmp.ne.s32.totalorder %s72, %s73
      %p84 = scmp.eq.s32.totalorder %s22, 0
      %p85 = por %p83, %p84
      %p86 = scmp.ne.s32.totalorder %s72, %s73
      %p87 = scmp.eq.s32.totalorder %s23, 1
      %p88 = por %p86, %p87
      %p90 = scmp.ne.s32.totalorder %s73, %s89
      %p91 = scmp.eq.s32.totalorder %s23, 0
      %p92 = por %p90, %p91
      %s93 = ssub.s32 %s24, %s36
      %s94 = ssub.s32 %s25, %s32
      %s95 = sor.u32 %s93, %s94
      %p96 = scmp.eq.s32.totalorder %s95, 0
      %s98 = sadd.s32 %s97, 1
      %s99 = scalar_select %p96, %s97, %s98
      %p102 = pneg %p96
      %p103 = scmp.eq.s32.totalorder %s17, 1
      %p104 = por %p102, %p103
      %p105 = scmp.ne.s32.totalorder %s97, %s100
      %p106 = scmp.eq.s32.totalorder %s17, 0
      %p107 = por %p105, %p106
      %p108 = scmp.ne.s32.totalorder %s97, %s100
      %p109 = scmp.eq.s32.totalorder %s22, 1
      %p110 = por %p108, %p109
      %p111 = scmp.ne.s32.totalorder %s100, %s101
      %p112 = scmp.eq.s32.totalorder %s22, 0
      %p113 = por %p111, %p112
      %p114 = scmp.ne.s32.totalorder %s100, %s101
      %p115 = scmp.eq.s32.totalorder %s23, 1
      %p116 = por %p114, %p115
      %p118 = scmp.ne.s32.totalorder %s101, %s117
      %p119 = scmp.eq.s32.totalorder %s23, 0
      %p120 = por %p118, %p119
      %p121 = scmp.le.s32.totalorder 1, %s17
      %p122 = scmp.lt.s32.totalorder %s17, 3
      %p123 = pnand %p121, %p122
      %p124 = pneg %p123
      // Predicated region
      $region9: #{tpu_custom_call.1} parent=5 // pred_check
        _
      $region10: #{tpu_custom_call.1} parent=5 // pred_check_branch
        %126 = sbr.rel (%p123) target = $region12
      $region11: #{tpu_custom_call.1} parent=5 // pred_region
        %s127 = ssub.s32 %s17, 1
      $region12: #{tpu_custom_call.1} parent=5 // pred_fallthru
        _
      %p128 = scmp.lt.s32.totalorder %s17, 2
      // Predicated region
      $region13: #{tpu_custom_call.1} parent=5 // pred_check
        %p129 = pneg %p128
      $region14: #{tpu_custom_call.1} parent=5 // pred_check_branch
        %131 = sbr.rel (%p129) target = $region16
      $region15: #{tpu_custom_call.1} parent=5 // pred_region
        // Predicated region
        $region17: #{tpu_custom_call.1} parent=15 // pred_check
          %p132 = pneg %p51
        $region18: #{tpu_custom_call.1} parent=15 // pred_check_branch
          %134 = sbr.rel (%p132) target = $region20
        $region19: #{tpu_custom_call.1} parent=15 // pred_region
          %s135 = sand.u32 %s41, 1
          %s136 = scalar_lea.sflag [#allocation3], %s135
          %s137 = sand.u32 %s41, 1
          %s138 = smul.addr %s137, 8
          %s139 = scalar_lea.vmem [#allocation2], %s138
          %s140 = smul.u32 2, %s25
          %s142 = ssub.s32 128, 128
          %143 = vsyncadd %s136, %s142
          %s144 = smul.addr %s24, 2
          %s145 = sadd.s32 %s140, %s144
          %s146 = smul.addr %s145, 64
          %s147 = scalar_lea.hbm %s0, %s146
          %s149 = sshll.u32 %s139, 4
          %s150 = int_to_ptr.vmem [resolvable:$true] %s149
          %152 = dma.hbm_to_vmem [thread:$0]  %s147, 128, %s150, %s136
        $region20: #{tpu_custom_call.1} parent=15 // pred_fallthru
          _
        // Predicated region
        $region21: #{tpu_custom_call.1} parent=15 // pred_check
          %p153 = pneg %p79
        $region22: #{tpu_custom_call.1} parent=15 // pred_check_branch
          %155 = sbr.rel (%p153) target = $region24
        $region23: #{tpu_custom_call.1} parent=15 // pred_region
          %s156 = sand.u32 %s69, 1
          %s157 = scalar_lea.sflag [#allocation6], %s156
          %s158 = sand.u32 %s69, 1
          %s159 = smul.addr %s158, 4
          %s160 = scalar_lea.vmem [#allocation5], %s159
          %s161 = smul.u32 2, %s25
          %s163 = ssub.s32 64, 64
          %164 = vsyncadd %s157, %s163
          %s165 = smul.addr %s24, 2
          %s166 = sadd.s32 %s161, %s165
          %s167 = smul.addr %s166, 32
          %s168 = scalar_lea.hbm %s1, %s167
          %s170 = sshll.u32 %s160, 4
          %s171 = int_to_ptr.vmem [resolvable:$true] %s170
          %173 = dma.hbm_to_vmem [thread:$0]  %s168, 64, %s171, %s157
        $region24: #{tpu_custom_call.1} parent=15 // pred_fallthru
          _
      $region16: #{tpu_custom_call.1} parent=5 // pred_fallthru
        _
      %p174 = scmp.le.s32.totalorder 1, %s17
      %p175 = scmp.lt.s32.totalorder %s17, 3
      %p176 = pnand %p174, %p175
      %p177 = pneg %p176
      // Predicated region
      $region25: #{tpu_custom_call.1} parent=5 // pred_check
        _
      $region26: #{tpu_custom_call.1} parent=5 // pred_check_branch
        %179 = sbr.rel (%p176) target = $region28
      $region27: #{tpu_custom_call.1} parent=5 // pred_region
        %s180 = ssub.s32 %s17, 1
        %s181 = sand.u32 %s44, 1
        %s182 = scalar_lea.sflag [#allocation3], %s181
        %s183 = sand.u32 %s44, 1
        %s184 = smul.addr %s183, 8
        %s185 = scalar_lea.vmem [#allocation2], %s184
        // Predicated region
        $region29: #{tpu_custom_call.1} parent=27 // pred_check
          %p186 = pneg %p57
        $region30: #{tpu_custom_call.1} parent=27 // pred_check_branch
          %188 = sbr.rel (%p186) target = $region32
        $region31: #{tpu_custom_call.1} parent=27 // pred_region
          %189 = dma.done %s182, 128
        $region32: #{tpu_custom_call.1} parent=27 // pred_fallthru
          _
        %s190 = sand.u32 %s72, 1
        %s191 = scalar_lea.sflag [#allocation6], %s190
        %s192 = sand.u32 %s72, 1
        %s193 = smul.addr %s192, 4
        %s194 = scalar_lea.vmem [#allocation5], %s193
        // Predicated region
        $region33: #{tpu_custom_call.1} parent=27 // pred_check
          %p195 = pneg %p85
        $region34: #{tpu_custom_call.1} parent=27 // pred_check_branch
          %197 = sbr.rel (%p195) target = $region36
        $region35: #{tpu_custom_call.1} parent=27 // pred_region
          %198 = dma.done %s191, 64
        $region36: #{tpu_custom_call.1} parent=27 // pred_fallthru
          _
        %s199 = sand.u32 %s44, 1
        %s200 = scalar_lea.sflag [#allocation3], %s199
        %s201 = sand.u32 %s44, 1
        %s202 = smul.addr %s201, 8
        %s203 = scalar_lea.vmem [#allocation2], %s202
        %p204 = pneg %p57
        %p205 = pneg %p54
        %s206 = sand.u32 %s72, 1
        %s207 = scalar_lea.sflag [#allocation6], %s206
        %s208 = sand.u32 %s72, 1
        %s209 = smul.addr %s208, 4
        %s210 = scalar_lea.vmem [#allocation5], %s209
        %p211 = pneg %p85
        %p212 = pneg %p82
        %p213 = pneg %p113
        %p214 = pneg %p110
        %s215 = sand.u32 %s100, 1
        %s216 = scalar_lea.sflag [#allocation4], %s215
        %s217 = sand.u32 %s100, 1
        %s218 = smul.addr %s217, 8
        %s219 = scalar_lea.vmem [#allocation7], %s218
        %s220 = smul.u32 2, %s27
        %s221 = smul.u32 2, %s27
        %v222 = vld [vmem:[%s185] sm:$0xff]
        %v223 = vld [vmem:[%s194] sm:$0xf]
        %v224 = vunpack.c.l.bf16 %v223
        %v226 = vcombine.high %v222, %v222
        %vm228 = vcmask 1043456
        %v229 = vsel %vm228, %v222, -inf
        %v230 = vrot.slane %v229, 4
        %v231 = vmax.f32 %v229, %v230
        %v232 = vrot.slane %v231, 2
        %v233 = vmax.f32 %v231, %v232
        %v234 = vrot.slane %v233, 1
        %v235 = vmax.f32 %v233, %v234
        %v236 = vsel %vm228, %v226, -inf
        %v237 = vrot.slane %v236, 4
        %v238 = vmax.f32 %v236, %v237
        %v239 = vrot.slane %v238, 2
        %v240 = vmax.f32 %v238, %v239
        %v241 = vrot.slane %v240, 1
        %v242 = vmax.f32 %v240, %v241
        %v245 = vcombine.low %v235, %v242
        %v247 = vsub.f32 %v222, %v245
        %v248 = vmul.f32 %v247, 1.442695
        %v249 = vpow.pop %v248
        %v251 = vcombine.high %v249, %v249
        %v253 = vsel %vm228, %v249, 0.0
        %v254 = vrot.slane %v253, 4
        %v255 = vadd.f32 %v253, %v254
        %v256 = vrot.slane %v255, 2
        %v257 = vadd.f32 %v255, %v256
        %v258 = vrot.slane %v257, 1
        %v259 = vadd.f32 %v257, %v258
        %v260 = vsel %vm228, %v251, 0.0
        %v261 = vrot.slane %v260, 4
        %v262 = vadd.f32 %v260, %v261
        %v263 = vrot.slane %v262, 2
        %v264 = vadd.f32 %v262, %v263
        %v265 = vrot.slane %v264, 1
        %v266 = vadd.f32 %v264, %v265
        %v267 = vrcp.pop %v259
        %v268 = vrcp.pop %v266
        %v269 = vmul.f32 %v259, %v267
        %v270 = vmul.f32 %v266, %v268
        %v271 = vsub.f32 2.0, %v269
        %v272 = vsub.f32 2.0, %v270
        %v273 = vmul.f32 %v267, %v271
        %v274 = vmul.f32 %v268, %v272
        %v277 = vcombine.low %v273, %v274
        %v279 = vmul.f32 %v249, %v277
        %v280 = vmul.f32 %v224, %v279
        %v282 = vcombine.high %v280, %v280
        %v284 = vsel %vm228, %v280, 0.0
        %v285 = vsel %vm228, %v282, 0.0
        %v286 = vadd.f32 %v284, %v285
        %287 = vadd.xlane.f32.xlu0 %v286
        %v288 = vpop.xlane.xlu0 %287
        %v290 = vcombine.high %v279, %v279
        %v292 = vsel %vm228, %v279, 0.0
        %v293 = vsel %vm228, %v290, 0.0
        %v294 = vadd.f32 %v292, %v293
        %295 = vadd.xlane.f32.xlu0 %v294
        %v296 = vpop.xlane.xlu0 %295
        %v298 = vrot.slane %v296, 4
        %v300 = vsel %vm228, %v288, %v298
        %302 = vset.pattern.permute.xlu0 0
        %303 = vperm.xlu0 %302, %v300
        %v304 = vpop.permute.xlu0 %303
        %306 = vst [vmem:[%s219] sm:$0xff] %v304
        %s307 = sand.u32 %s100, 1
        %s308 = scalar_lea.sflag [#allocation4], %s307
        %s309 = sand.u32 %s100, 1
        %s310 = smul.addr %s309, 8
        %s311 = scalar_lea.vmem [#allocation7], %s310
        // Predicated region
        $region37: #{tpu_custom_call.1} parent=27 // pred_check
          %p312 = pneg %p110
        $region38: #{tpu_custom_call.1} parent=27 // pred_check_branch
          %314 = sbr.rel (%p312) target = $region40
        $region39: #{tpu_custom_call.1} parent=27 // pred_region
          %s316 = ssub.s32 128, 128
          %317 = vsyncadd %s308, %s316
          %s318 = sadd.s32 %s27, %s26
          %s319 = smul.addr %s318, 128
          %s320 = scalar_lea.hbm %s2, %s319
          %s322 = sshll.u32 %s311, 4
          %s323 = int_to_ptr.vmem [resolvable:$true] %s322
          %325 = dma.vmem_to_hbm [thread:$0]  %s323, 128, %s320, %s308
        $region40: #{tpu_custom_call.1} parent=27 // pred_fallthru
          _
      $region28: #{tpu_custom_call.1} parent=5 // pred_fallthru
        _
      %p326 = scmp.le.s32.totalorder 2, %s17
      // Predicated region
      $region41: #{tpu_custom_call.1} parent=5 // pred_check
        %p327 = pneg %p326
      $region42: #{tpu_custom_call.1} parent=5 // pred_check_branch
        %329 = sbr.rel (%p327) target = $region44
      $region43: #{tpu_custom_call.1} parent=5 // pred_region
        %s330 = ssub.s32 %s17, 2
        // Predicated region
        $region45: #{tpu_custom_call.1} parent=43 // pred_check
          %p331 = pneg %p116
        $region46: #{tpu_custom_call.1} parent=43 // pred_check_branch
          %333 = sbr.rel (%p331) target = $region48
        $region47: #{tpu_custom_call.1} parent=43 // pred_region
          %s334 = sand.u32 %s101, 1
          %s335 = scalar_lea.sflag [#allocation4], %s334
          %s336 = sand.u32 %s101, 1
          %s337 = smul.addr %s336, 8
          %s338 = scalar_lea.vmem [#allocation7], %s337
          %339 = dma.done %s335, 128
        $region48: #{tpu_custom_call.1} parent=43 // pred_fallthru
          _
      $region44: #{tpu_custom_call.1} parent=5 // pred_fallthru
        _
    $region6: #{tpu_custom_call.1} parent=1 // loop_footer
      %s21 = sadd.s32 1, %s17
    $region7: #{tpu_custom_call.1} parent=1 // loop_footer_branch
      %16 = sbr.rel target = $region3
    $region8: #{tpu_custom_call.1} parent=1 // loop_exit
      _
    %340 = vsyncpa [#allocation3], 1
    %s341 = scalar_lea.sflag [#allocation3], 1
    %342 = vsyncpa %s341, 1
    %343 = vsyncpa [#allocation6], 1
    %s344 = scalar_lea.sflag [#allocation6], 1
    %345 = vsyncpa %s344, 1
    %346 = vsyncpa [#allocation4], 1
    %s347 = scalar_lea.sflag [#allocation4], 1
    %348 = vsyncpa %s347, 1

</llo_original>
